<compile_context>
chip_gen: v7x
topology: tpu7x:2x2x1
jax: 0.10.0
libtpu: 0.0.40
codegen_flags: <defaults>
</compile_context>

<pallas_src>
import jax
import jax.numpy as jnp
from jax.experimental import pallas as pl
from jax.experimental.pallas import tpu as pltpu


def _round_up(x: int, m: int) -> int:
    return (x + m - 1) // m * m


def _my_softmax_kernel(x_ref, o_ref):
    # One (N, TD) column strip per grid step; full reduction axis is resident.
    x = x_ref[...].astype(jnp.float32)
    e = jnp.exp(x)                                   # EUP transcendental
    denom = jnp.sum(e, axis=0, keepdims=True)        # XLU sublane reduce (f32 acc)
    inv = pl.reciprocal(denom, approx=True)          # only TD reciprocals (EUP)
    o_ref[...] = (e * inv).astype(o_ref.dtype)       # broadcast on VALU


def _choose_tile_d(n: int, d: int, td_max: int) -> int:
    """Pick a lane-dense (multiple of 128) tile width that fits VMEM."""
    # Budget for ~(2 arrays x 2 double-buffers) of f32 (N, TD) blocks; stay
    # well under the 32 MiB default scoped limit (and v7x's 64 MiB physical).
    budget_bytes = 16 * 1024 * 1024
    cap = budget_bytes // (4 * 4 * max(n, 1))        # TD elems fitting budget
    cap = max(128, (cap // 128) * 128)
    td_max = max(128, (td_max // 128) * 128)
    td = min(td_max, cap, _round_up(d, 128))
    return max(128, (td // 128) * 128)


def _my_softmax_2d(x: jax.Array, td_max: int) -> jax.Array:
    n, d = x.shape
    td = _choose_tile_d(n, d, td_max)
    d_pad = _round_up(d, td)

    # Pad the feature axis so every block is lane-dense. Padded columns are
    # independent (the reduction is per-column) and are sliced off afterwards.
    x_in = jnp.pad(x, ((0, 0), (0, d_pad - d))) if d_pad != d else x

    out_padded = pl.pallas_call(
        _my_softmax_kernel,
        out_shape=jax.ShapeDtypeStruct((n, d_pad), x.dtype),
        grid=(d_pad // td,),
        in_specs=[pl.BlockSpec((n, td), lambda j: (0, j))],
        out_specs=pl.BlockSpec((n, td), lambda j: (0, j)),
        compiler_params=pltpu.CompilerParams(
            dimension_semantics=("parallel",)
        ),
    )(x_in)

    return out_padded[:, :d] if d_pad != d else out_padded


def my_softmax(x: jax.Array, *, td_max: int = 512) -> jax.Array:
    """exp(x) / sum(exp(x), dim=0), matching the PyTorch module semantics."""
    if x.ndim == 0:
        raise ValueError("my_softmax requires at least 1 dimension")
    if x.ndim == 1:
        return _my_softmax_2d(x.reshape(x.shape[0], 1), td_max).reshape(x.shape)
    if x.ndim == 2:
        return _my_softmax_2d(x, td_max)
    # Higher rank: sum over dim=0 is per-(trailing-index) column, so flatten
    # trailing dims into the lane axis, compute, and restore the shape.
    n = x.shape[0]
    out = _my_softmax_2d(x.reshape(n, -1), td_max)
    return out.reshape(x.shape)


if __name__ == "__main__":
    key = jax.random.PRNGKey(0)

    # Shape consistent with the module's forward: (seq=8, hidden=32).
    x = jax.random.normal(key, (8, 32), dtype=jnp.float32)
    out = jax.block_until_ready(my_softmax(x))

    ref = jnp.exp(x) / jnp.sum(jnp.exp(x), axis=0)
    assert out.shape == x.shape and out.dtype == x.dtype
    # approx reciprocal => slightly looser tolerance than exact divide.
    assert jnp.allclose(out, ref, rtol=2e-3, atol=2e-3)

    # Second check: ragged D (padding path) and multiple grid steps.
    x2 = jax.random.normal(jax.random.PRNGKey(1), (16, 300), dtype=jnp.float32)
    out2 = jax.block_until_ready(my_softmax(x2, td_max=128))
    ref2 = jnp.exp(x2) / jnp.sum(jnp.exp(x2), axis=0)
    assert out2.shape == x2.shape and out2.dtype == x2.dtype
    assert jnp.allclose(out2, ref2, rtol=2e-3, atol=2e-3)

    # Third check: 3-D input (flattened-trailing-dims path), bf16 dtype.
    x3 = jax.random.normal(jax.random.PRNGKey(2), (8, 4, 32), dtype=jnp.bfloat16)
    out3 = jax.block_until_ready(my_softmax(x3))
    ref3 = (jnp.exp(x3.astype(jnp.float32))
            / jnp.sum(jnp.exp(x3.astype(jnp.float32)), axis=0)).astype(jnp.bfloat16)
    assert out3.shape == x3.shape and out3.dtype == x3.dtype
    assert jnp.allclose(out3.astype(jnp.float32), ref3.astype(jnp.float32),
                        rtol=2e-2, atol=2e-2)

    print("KERNEL_OK")
</pallas_src>

<mosaic_0001>
module attributes {stable_mosaic.version = 11 : i64} {
  func.func @_my_softmax_kernel(%arg0: i32, %arg1: memref<8x128xf32, #tpu.memory_space<vmem>>, %arg2: memref<8x128xf32, #tpu.memory_space<vmem>>) attributes {dimension_semantics = [#tpu.dimension_semantics<parallel>], iteration_bounds = array<i64: 1>, scalar_prefetch = 0 : i64, scratch_operands = 0 : i64, tpu.core_type = #tpu.core_type<tc>, window_params = [{transform_indices = @transform_0, window_bounds = array<i64: 8, 128>}, {transform_indices = @transform_1, window_bounds = array<i64: 8, 128>}]} {
    %c0 = arith.constant 0 : index
    %c0_0 = arith.constant 0 : index
    %0 = vector.load %arg1[%c0, %c0_0] : memref<8x128xf32, #tpu.memory_space<vmem>>, vector<8x128xf32>
    %1 = math.exp %0 : vector<8x128xf32>
    %cst = arith.constant dense<0.000000e+00> : vector<128xf32>
    %2 = vector.multi_reduction <add>, %1, %cst [0] : vector<8x128xf32> to vector<128xf32>
    %3 = vector.shape_cast %2 : vector<128xf32> to vector<1x128xf32>
    %4 = tpu.reciprocal %3 {approx = true} : vector<1x128xf32> -> vector<1x128xf32>
    %5 = vector.broadcast %4 : vector<1x128xf32> to vector<8x128xf32>
    %6 = arith.mulf %1, %5 : vector<8x128xf32>
    %c0_1 = arith.constant 0 : index
    %c0_2 = arith.constant 0 : index
    %7 = vector.load %arg2[%c0_1, %c0_2] : memref<8x128xf32, #tpu.memory_space<vmem>>, vector<8x128xf32>
    tpu.vector_store %arg2[%c0_1, %c0_2], %6 {strides = array<i32>} : memref<8x128xf32, #tpu.memory_space<vmem>>, vector<8x128xf32>,
    return
  }
  func.func @transform_0(%arg0: i32) -> (i32, i32) {
    %c0_i32 = arith.constant 0 : i32
    %c0_i32_0 = arith.constant 0 : i32
    return %c0_i32, %arg0 : i32, i32
  }
  func.func @transform_1(%arg0: i32) -> (i32, i32) {
    %c0_i32 = arith.constant 0 : i32
    %c0_i32_0 = arith.constant 0 : i32
    return %c0_i32, %arg0 : i32, i32
  }
}

</mosaic_0001>

<llo_original>
// kernel: tpu_custom_call.1
$region0: #{tpu_custom_call.1}
  #allocation0 [shape = 'u32[]', space=smem, size = 0x4, offset = 0x4, fixed_abs, tag = 'smem constant byte address 0x4 - core index']
  #allocation1 [shape = 'u32[144,128]{1,0:T(1,128)}', space=vmem, size = 0x12000, scoped, tag = 'internal scratch']
  %s0 = inlined_call_operand.hbm [shape: f32[8,128], index: 0, kind: input, shape index: {}]
  %s1 = inlined_call_operand.hbm [shape: f32[8,128], index: 1, kind: output, shape index: {}]
  %s2 = sld [smem:[#allocation0]]
  $region18: #{tpu_custom_call.1} parent=0
    _
  %s4 = ssub.s32 1, %s2
  %s5 = scalar_select 0, %s4, %s2
  $region1: #{tpu_custom_call.1} parent=0
    #allocation2 [shape = 'u8[4096]{0}', space=vmem, size = 0x1000, scoped, tag = 'input window, operand 0, single buffered']
    #allocation3 [shape = 's32[1]{0}', space=sflag, size = 0x4, scoped, tag = 'scoped memory for tpu_custom_call.1']
    #allocation4 [shape = 's32[1]{0}', space=sflag, size = 0x4, scoped, tag = 'scoped memory for tpu_custom_call.1']
    #allocation5 [shape = 'u8[4096]{0}', space=vmem, size = 0x1000, scoped, tag = 'output window, operand 0, single buffered']
    %6 = vsyncpa [#allocation3], 0
    %7 = vsyncpa [#allocation4], 0
    // Predicated region
    $region2: #{tpu_custom_call.1} parent=1 // pred_check
      _
    $region3: #{tpu_custom_call.1} parent=1 // pred_check_branch
      %9 = sbr.rel (0) target = $region5
    $region4: #{tpu_custom_call.1} parent=1 // pred_region
      %s11 = ssub.s32 128, 128
      %12 = vsyncadd [#allocation3], %s11
      %s14 = sshll.u32 [#allocation2], 4
      %s15 = int_to_ptr.vmem [resolvable:$true] %s14
      %17 = dma.hbm_to_vmem [thread:$0]  %s0, 128, %s15, [#allocation3]
    $region5: #{tpu_custom_call.1} parent=1 // pred_fallthru
      _
    // Predicated region
    $region6: #{tpu_custom_call.1} parent=1 // pred_check
      _
    $region7: #{tpu_custom_call.1} parent=1 // pred_check_branch
      %19 = sbr.rel (0) target = $region9
    $region8: #{tpu_custom_call.1} parent=1 // pred_region
      %20 = dma.done [#allocation3], 128
    $region9: #{tpu_custom_call.1} parent=1 // pred_fallthru
      _
    %v21 = vld [vmem:[#allocation2] sm:$0xff]
    %v22 = vmul.f32 %v21, 1.442695
    %v23 = vpow.pop %v22
    %v24 = vrot.slane %v23, 4
    %v25 = vadd.f32 %v23, %v24
    %v26 = vrot.slane %v25, 2
    %v27 = vadd.f32 %v25, %v26
    %v28 = vrot.slane %v27, 1
    %v29 = vadd.f32 %v27, %v28
    %v30 = vrcp.pop %v29
    %v31 = vmul.f32 %v23, %v30
    %32 = vst [vmem:[#allocation5] sm:$0xff] %v31
    // Predicated region
    $region10: #{tpu_custom_call.1} parent=1 // pred_check
      _
    $region11: #{tpu_custom_call.1} parent=1 // pred_check_branch
      %34 = sbr.rel (0) target = $region13
    $region12: #{tpu_custom_call.1} parent=1 // pred_region
      %s36 = ssub.s32 128, 128
      %37 = vsyncadd [#allocation4], %s36
      %s39 = sshll.u32 [#allocation5], 4
      %s40 = int_to_ptr.vmem [resolvable:$true] %s39
      %42 = dma.vmem_to_hbm [thread:$0]  %s40, 128, %s1, [#allocation4]
    $region13: #{tpu_custom_call.1} parent=1 // pred_fallthru
      _
    // Predicated region
    $region14: #{tpu_custom_call.1} parent=1 // pred_check
      _
    $region15: #{tpu_custom_call.1} parent=1 // pred_check_branch
      %44 = sbr.rel (0) target = $region17
    $region16: #{tpu_custom_call.1} parent=1 // pred_region
      %45 = dma.done [#allocation4], 128
    $region17: #{tpu_custom_call.1} parent=1 // pred_fallthru
      _
    %46 = vsyncpa [#allocation3], 1
    %47 = vsyncpa [#allocation4], 1

</llo_original>
